<compile_context>
chip_gen: v7x
topology: tpu7x:2x2x1
jax: 0.10.0
libtpu: 0.0.40
codegen_flags: <defaults>
</compile_context>

<pallas_src>
import math

import jax
import jax.numpy as jnp
from jax.experimental import pallas as pl
from jax.experimental.pallas import tpu as pltpu


def _cast_kernel(x_ref, o_ref):
    # Elementwise truncating cast float -> int32; the whole hot path.
    o_ref[...] = x_ref[...].astype(jnp.int32)


def _round_up(n, m):
    return ((n + m - 1) // m) * m


def _gen_params():
    """Returns (max_tile_bytes, vmem_limit_bytes), sized per TPU generation."""
    vmem = None
    try:
        vmem = getattr(pltpu.get_tpu_info(), "vmem_capacity_bytes", None)
    except Exception:
        vmem = None
    if vmem is not None and vmem >= 128 * 1024 * 1024:
        # v5e / v6e (128 MiB VMEM): bigger tiles -> fewer per-step overheads.
        return 8 * 1024 * 1024, 64 * 1024 * 1024
    # v7x (64 MiB VMEM) or unknown part: conservative caps, leave headroom.
    return 4 * 1024 * 1024, 32 * 1024 * 1024


def _cast_2d(x2d, max_tile_bytes, vmem_limit_bytes):
    """Row-tiled float->int32 cast of a 2-D slab (rows, lanes)."""
    rows, lanes = x2d.shape
    bytes_per_row = lanes * 4

    # Largest row-tile (multiple of 8) under the per-tile byte budget.
    tile_rows = max(8, (max_tile_bytes // bytes_per_row) // 8 * 8)
    tile_rows = min(rows, tile_rows)

    # Guarantee >= 2 grid steps for moderately sized inputs so the "parallel"
    # axis can shard across v7x's 2 TensorCores (no-op on single-TC v5e/v6e).
    total_bytes = rows * bytes_per_row
    if tile_rows == rows and rows > 8 and total_bytes >= 512 * 1024:
        tile_rows = _round_up(pl.cdiv(rows, 2), 8)

    grid = (pl.cdiv(rows, tile_rows),)  # partial final block is masked by Pallas

    return pl.pallas_call(
        _cast_kernel,
        out_shape=jax.ShapeDtypeStruct((rows, lanes), jnp.int32),
        grid=grid,
        in_specs=[pl.BlockSpec((tile_rows, lanes), lambda i: (i, 0))],
        out_specs=pl.BlockSpec((tile_rows, lanes), lambda i: (i, 0)),
        compiler_params=pltpu.CompilerParams(
            dimension_semantics=("parallel",),
            vmem_limit_bytes=vmem_limit_bytes,
        ),
    )(x2d)


def pre_embed(x):
    """Pallas implementation of PreEmbed.forward.

    x: float array of shape (..., 1).  Returns int32 array of shape (...,),
    values truncated toward zero (torch emits int64; see TODO above).
    """
    assert x.shape[-1] == 1, "PreEmbed expects a trailing singleton dim"
    out_shape = x.shape[:-1]          # glue: squeeze(-1)
    n = math.prod(out_shape)
    if n == 0:
        return jnp.zeros(out_shape, jnp.int32)

    max_tile_bytes, vmem_limit_bytes = _gen_params()

    # ---- layout plumbing: free contiguous reshapes only, no pad / no slice --
    if n % 128 == 0:
        # Fully lane-dense slab: every store is an unmasked full-lane vst.
        lanes = 128
        for cand in (1024, 512, 256):
            if n % cand == 0:
                lanes = cand
                break
        rows = n // lanes
    elif len(out_shape) >= 2:
        # Unaligned total size: present (prod(leading), last_dim) directly.
        # The ragged lane column uses masked stores, but HBM traffic stays at
        # the minimal read + write (no pad copy, no output slice copy).
        lanes = out_shape[-1]
        rows = n // lanes
    else:
        lanes = n
        rows = 1

    if lanes * 4 * 8 * 4 > vmem_limit_bytes:
        # Pathologically wide unaligned last dim: even an 8-row tile would not
        # fit the VMEM budget.
        # TODO(synk): no clean single-kernel tiling here; fall back to XLA cast.
        return x.reshape(out_shape).astype(jnp.int32)

    out2d = _cast_2d(x.reshape(rows, lanes), max_tile_bytes, vmem_limit_bytes)
    return out2d.reshape(out_shape)


if __name__ == "__main__":
    key = jax.random.PRNGKey(0)
    k1, k2, k3 = jax.random.split(key, 3)

    # 1) Small aligned case: (B, C, S, 1) -> 128 elements, one lane-dense tile.
    B, C, S = 2, 4, 16
    x = jax.random.uniform(k1, (B, C, S, 1), dtype=jnp.float32,
                           minval=-10.0, maxval=10.0)
    out = jax.block_until_ready(pre_embed(x))
    ref = jnp.trunc(x[..., 0]).astype(jnp.int32)
    assert out.shape == (B, C, S), out.shape
    assert out.dtype == jnp.int32, out.dtype
    assert bool(jnp.all(out == ref)), "mismatch vs reference (aligned case)"

    # 2) Non-multiple-of-128 size: ragged-lane path, no pad / no output slice.
    x2 = jax.random.uniform(k2, (3, 5, 100, 1), dtype=jnp.float32,
                            minval=-50.0, maxval=50.0)
    out2 = jax.block_until_ready(pre_embed(x2))
    ref2 = jnp.trunc(x2[..., 0]).astype(jnp.int32)
    assert out2.shape == (3, 5, 100), out2.shape
    assert bool(jnp.all(out2 == ref2)), "mismatch vs reference (ragged case)"

    # 3) Medium aligned case (25*8192 = 204800 elems): exercises the >=2-step
    #    parallel grid and a Pallas-masked partial final row block.
    x3 = jax.random.uniform(k3, (25, 8192, 1), dtype=jnp.float32,
                            minval=-100.0, maxval=100.0)
    out3 = jax.block_until_ready(pre_embed(x3))
    ref3 = jnp.trunc(x3[..., 0]).astype(jnp.int32)
    assert out3.shape == (25, 8192), out3.shape
    assert bool(jnp.all(out3 == ref3)), "mismatch vs reference (multi-tile case)"

    print("KERNEL_OK")
</pallas_src>

<mosaic_0001>
module attributes {stable_mosaic.version = 11 : i64} {
  func.func @_cast_kernel(%arg0: i32, %arg1: memref<1x128xf32, #tpu.memory_space<vmem>>, %arg2: memref<1x128xi32, #tpu.memory_space<vmem>>) attributes {dimension_semantics = [#tpu.dimension_semantics<parallel>], iteration_bounds = array<i64: 1>, scalar_prefetch = 0 : i64, scratch_operands = 0 : i64, tpu.core_type = #tpu.core_type<tc>, window_params = [{transform_indices = @transform_0, window_bounds = array<i64: 1, 128>}, {transform_indices = @transform_1, window_bounds = array<i64: 1, 128>}]} {
    %c0 = arith.constant 0 : index
    %c0_0 = arith.constant 0 : index
    %0 = vector.load %arg1[%c0, %c0_0] : memref<1x128xf32, #tpu.memory_space<vmem>>, vector<1x128xf32>
    %1 = arith.fptosi %0 : vector<1x128xf32> to vector<1x128xi32>
    %c0_1 = arith.constant 0 : index
    %c0_2 = arith.constant 0 : index
    %2 = vector.load %arg2[%c0_1, %c0_2] : memref<1x128xi32, #tpu.memory_space<vmem>>, vector<1x128xi32>
    tpu.vector_store %arg2[%c0_1, %c0_2], %1 {strides = array<i32>} : memref<1x128xi32, #tpu.memory_space<vmem>>, vector<1x128xi32>,
    return
  }
  func.func @transform_0(%arg0: i32) -> (i32, i32) {
    %c0_i32 = arith.constant 0 : i32
    %c0_i32_0 = arith.constant 0 : i32
    return %arg0, %c0_i32 : i32, i32
  }
  func.func @transform_1(%arg0: i32) -> (i32, i32) {
    %c0_i32 = arith.constant 0 : i32
    %c0_i32_0 = arith.constant 0 : i32
    return %arg0, %c0_i32 : i32, i32
  }
}

</mosaic_0001>

<llo_original>
// kernel: tpu_custom_call.1
$region0: #{tpu_custom_call.1}
  #allocation0 [shape = 'u32[]', space=smem, size = 0x4, offset = 0x4, fixed_abs, tag = 'smem constant byte address 0x4 - core index']
  #allocation1 [shape = 'u32[144,128]{1,0:T(1,128)}', space=vmem, size = 0x12000, scoped, tag = 'internal scratch']
  %s0 = inlined_call_operand.hbm [shape: f32[1,128], index: 0, kind: input, shape index: {}]
  %s1 = inlined_call_operand.hbm [shape: s32[1,128], index: 1, kind: output, shape index: {}]
  %s2 = sld [smem:[#allocation0]]
  $region18: #{tpu_custom_call.1} parent=0
    _
  %s4 = ssub.s32 1, %s2
  %s5 = scalar_select 0, %s4, %s2
  $region1: #{tpu_custom_call.1} parent=0
    #allocation2 [shape = 'u8[512]{0}', space=vmem, size = 0x400, scoped, tag = 'input window, operand 0, single buffered']
    #allocation3 [shape = 's32[1]{0}', space=sflag, size = 0x4, scoped, tag = 'scoped memory for tpu_custom_call.1']
    #allocation4 [shape = 's32[1]{0}', space=sflag, size = 0x4, scoped, tag = 'scoped memory for tpu_custom_call.1']
    #allocation5 [shape = 'u8[512]{0}', space=vmem, size = 0x400, scoped, tag = 'output window, operand 0, single buffered']
    %6 = vsyncpa [#allocation3], 0
    %7 = vsyncpa [#allocation4], 0
    // Predicated region
    $region2: #{tpu_custom_call.1} parent=1 // pred_check
      _
    $region3: #{tpu_custom_call.1} parent=1 // pred_check_branch
      %9 = sbr.rel (0) target = $region5
    $region4: #{tpu_custom_call.1} parent=1 // pred_region
      %s11 = ssub.s32 16, 16
      %12 = vsyncadd [#allocation3], %s11
      %s14 = sshll.u32 [#allocation2], 4
      %s15 = int_to_ptr.vmem [resolvable:$true] %s14
      %17 = dma.hbm_to_vmem [thread:$0]  %s0, 16, %s15, [#allocation3]
    $region5: #{tpu_custom_call.1} parent=1 // pred_fallthru
      _
    // Predicated region
    $region6: #{tpu_custom_call.1} parent=1 // pred_check
      _
    $region7: #{tpu_custom_call.1} parent=1 // pred_check_branch
      %19 = sbr.rel (0) target = $region9
    $region8: #{tpu_custom_call.1} parent=1 // pred_region
      %20 = dma.done [#allocation3], 16
    $region9: #{tpu_custom_call.1} parent=1 // pred_fallthru
      _
    %v21 = vld [vmem:[#allocation2] sm:$0x1]
    %v22 = vcvt.f32.s32.to.zero.pseudo %v21
    %23 = vst [vmem:[#allocation5] sm:$0x1] %v22
    // Predicated region
    $region10: #{tpu_custom_call.1} parent=1 // pred_check
      _
    $region11: #{tpu_custom_call.1} parent=1 // pred_check_branch
      %25 = sbr.rel (0) target = $region13
    $region12: #{tpu_custom_call.1} parent=1 // pred_region
      %s27 = ssub.s32 16, 16
      %28 = vsyncadd [#allocation4], %s27
      %s30 = sshll.u32 [#allocation5], 4
      %s31 = int_to_ptr.vmem [resolvable:$true] %s30
      %33 = dma.vmem_to_hbm [thread:$0]  %s31, 16, %s1, [#allocation4]
    $region13: #{tpu_custom_call.1} parent=1 // pred_fallthru
      _
    // Predicated region
    $region14: #{tpu_custom_call.1} parent=1 // pred_check
      _
    $region15: #{tpu_custom_call.1} parent=1 // pred_check_branch
      %35 = sbr.rel (0) target = $region17
    $region16: #{tpu_custom_call.1} parent=1 // pred_region
      %36 = dma.done [#allocation4], 16
    $region17: #{tpu_custom_call.1} parent=1 // pred_fallthru
      _
    %37 = vsyncpa [#allocation3], 1
    %38 = vsyncpa [#allocation4], 1

</llo_original>
